<compile_context>
chip_gen: v7x
topology: tpu7x:2x2x1
jax: 0.10.0
libtpu: 0.0.40
codegen_flags: <defaults>
</compile_context>

<pallas_src>
import functools

import jax
import jax.numpy as jnp
from jax.experimental import pallas as pl
from jax.experimental.pallas import tpu as pltpu

BN_EPS = 1e-5
# bf16 MXU inputs with f32 accumulation.  Set to jnp.float32 for bit-faithful
# f32 matmuls (slower on the MXU, 2x weight HBM traffic).
MXU_DTYPE = jnp.bfloat16

# Tile preferences.  Demo shapes are tiny; production shapes (2048 features,
# 8192-8192-8192 projector) should use 256/512-wide, generation-sized tiles
# (keep the double-buffered footprint well under v7x's 64 MiB VMEM, e.g. via
# pltpu.CompilerParams(vmem_limit_bytes=...)).
TN_PREF = 128
TK_PREF = 256
LOSS_TILE_PREF = 128


def _pick_tile(dim, pref):
    """Largest 128-multiple tile <= pref that divides dim, else the full dim."""
    if dim <= pref:
        return dim
    t = pref
    while t >= 128:
        if dim % t == 0:
            return t
        t //= 2
    return dim


# ----------------------------------------------------------------------------
# Fused dual-view Linear (+ optional BatchNorm1d + ReLU) kernel
# ----------------------------------------------------------------------------
def _dual_linear_bn_kernel(x1_ref, x2_ref, w_ref, g_ref, b_ref,
                           o1_ref, o2_ref, acc1_ref, acc2_ref, *, bn, relu):
    """One (n, k) grid step of out_v = [ReLU][BN](x_v @ w) for both views."""
    k = pl.program_id(1)

    @pl.when(k == 0)
    def _init():
        acc1_ref[...] = jnp.zeros_like(acc1_ref)
        acc2_ref[...] = jnp.zeros_like(acc2_ref)

    # Weight tile is loaded once and used for both views (halves weight HBM
    # traffic vs. running the two views through separate calls).
    w = w_ref[...]
    acc1_ref[...] += jnp.dot(x1_ref[...].astype(w.dtype), w,
                             preferred_element_type=jnp.float32)
    acc2_ref[...] += jnp.dot(x2_ref[...].astype(w.dtype), w,
                             preferred_element_type=jnp.float32)

    @pl.when(k == pl.num_programs(1) - 1)
    def _finalize():
        def _epilogue(acc, o_ref):
            y = acc
            if bn:
                # BatchNorm1d training-mode batch stats (biased variance);
                # exact within the N-tile since stats are per feature column.
                mean = jnp.mean(y, axis=0, keepdims=True)
                var = jnp.mean((y - mean) ** 2, axis=0, keepdims=True)
                y = (y - mean) * jax.lax.rsqrt(var + BN_EPS)
                y = y * g_ref[...] + b_ref[...]
            if relu:
                y = jnp.maximum(y, 0.0)
            o_ref[...] = y

        _epilogue(acc1_ref[...], o1_ref)
        _epilogue(acc2_ref[...], o2_ref)


def dual_linear_bn_relu(x1, x2, w, gamma, beta, *, bn, relu):
    """Run both views through one Linear(no bias) [+ BN + ReLU].

    x1, x2: [B, K] f32.  w: [K, N] (bf16 or f32).  gamma/beta: [1, N] f32.
    Returns (out1, out2): [B, N] f32 each.
    """
    B, K = x1.shape
    Kw, N = w.shape
    assert Kw == K and x2.shape == (B, K)

    tn = _pick_tile(N, TN_PREF)
    tk = _pick_tile(K, TK_PREF)
    grid = (N // tn, K // tk)

    kernel = functools.partial(_dual_linear_bn_kernel, bn=bn, relu=relu)
    return pl.pallas_call(
        kernel,
        out_shape=(jax.ShapeDtypeStruct((B, N), jnp.float32),
                   jax.ShapeDtypeStruct((B, N), jnp.float32)),
        grid=grid,
        in_specs=[
            pl.BlockSpec((B, tk), lambda n, k: (0, k)),    # x1
            pl.BlockSpec((B, tk), lambda n, k: (0, k)),    # x2
            pl.BlockSpec((tk, tn), lambda n, k: (k, n)),   # w
            pl.BlockSpec((1, tn), lambda n, k: (0, n)),    # gamma
            pl.BlockSpec((1, tn), lambda n, k: (0, n)),    # beta
        ],
        out_specs=(
            pl.BlockSpec((B, tn), lambda n, k: (0, n)),
            pl.BlockSpec((B, tn), lambda n, k: (0, n)),
        ),
        scratch_shapes=[pltpu.VMEM((B, tn), jnp.float32),
                        pltpu.VMEM((B, tn), jnp.float32)],
        compiler_params=pltpu.CompilerParams(
            dimension_semantics=("parallel", "arbitrary")),
    )(x1, x2, w, gamma, beta)


# ----------------------------------------------------------------------------
# Tiled Barlow-Twins loss kernel (inputs already batch-normalized)
# ----------------------------------------------------------------------------
def _barlow_loss_kernel(z1_ref, z2_ref, o_ref, acc_ref, *, inv_batch, lambd):
    i = pl.program_id(0)
    j = pl.program_id(1)

    @pl.when((i == 0) & (j == 0))
    def _init():
        acc_ref[0] = jnp.float32(0.0)

    # (tI, tJ) tile of c = bn(z1).T @ bn(z2) / batch_size; z tiles are already
    # normalized (affine-free BN fused into the last projector layer).
    c = jax.lax.dot_general(
        z1_ref[...], z2_ref[...],
        dimension_numbers=(((0,), (0,)), ((), ())),
        preferred_element_type=jnp.float32) * inv_batch

    @pl.when(i == j)
    def _diag_tile():
        # tI == tJ, so local diag == global diag inside this tile only.
        rows = jax.lax.broadcasted_iota(jnp.int32, c.shape, 0)
        cols = jax.lax.broadcasted_iota(jnp.int32, c.shape, 1)
        is_diag = rows == cols
        acc_ref[0] += jnp.sum(
            jnp.where(is_diag, (c - 1.0) ** 2, jnp.float32(lambd) * c * c))

    @pl.when(i != j)
    def _off_tile():
        acc_ref[0] += jnp.float32(lambd) * jnp.sum(c * c)

    @pl.when((i == pl.num_programs(0) - 1) & (j == pl.num_programs(1) - 1))
    def _store():
        o_ref[0, 0] = acc_ref[0]


def barlow_loss(z1n, z2n, lambd):
    """z1n, z2n: [B, D] batch-normalized embeddings -> scalar loss."""
    B, D = z1n.shape
    t = _pick_tile(D, LOSS_TILE_PREF)
    grid = (D // t, D // t)
    kernel = functools.partial(_barlow_loss_kernel,
                               inv_batch=1.0 / B, lambd=float(lambd))
    out = pl.pallas_call(
        kernel,
        out_shape=jax.ShapeDtypeStruct((1, 1), jnp.float32),
        grid=grid,
        in_specs=[pl.BlockSpec((B, t), lambda i, j: (0, i)),
                  pl.BlockSpec((B, t), lambda i, j: (0, j))],
        out_specs=pl.BlockSpec((1, 1), lambda i, j: (0, 0)),
        scratch_shapes=[pltpu.SMEM((1,), jnp.float32)],
        # Both grid axes accumulate into one SMEM scalar -> "arbitrary".
        compiler_params=pltpu.CompilerParams(
            dimension_semantics=("arbitrary", "arbitrary")),
    )(z1n, z2n)
    return out[0, 0]


# ----------------------------------------------------------------------------
# BarlowTwins (JAX / Pallas)
# ----------------------------------------------------------------------------
class BarlowTwinsPallas:
    """JAX/Pallas analogue of the PyTorch BarlowTwins module (training path)."""

    def __init__(self, key, in_dim, feature_dim, projector_sizes, lambd):
        self.lambd = float(lambd)

        sizes = [feature_dim] + list(projector_sizes)
        keys = jax.random.split(key, len(sizes))

        def _init_w(k, fan_in, fan_out):
            w = jax.random.normal(k, (fan_in, fan_out), jnp.float32)
            return (w * (1.0 / jnp.sqrt(fan_in))).astype(MXU_DTYPE)

        # TODO(synk): the torchvision wide_resnet50_2 backbone is replaced by
        # a single Pallas linear feature extractor (in_dim -> feature_dim);
        # a full ResNet has no compact single-kernel Pallas equivalent here.
        self.w_backbone = _init_w(keys[0], in_dim, feature_dim)
        self._dummy_g = jnp.ones((1, feature_dim), jnp.float32)
        self._dummy_b = jnp.zeros((1, feature_dim), jnp.float32)

        # Projector: Linear(no bias) -> BN -> ReLU (x2), then final Linear.
        self.proj_ws, self.bn_gammas, self.bn_betas = [], [], []
        for i in range(len(sizes) - 1):
            self.proj_ws.append(_init_w(keys[i + 1], sizes[i], sizes[i + 1]))
            if i < len(sizes) - 2:
                self.bn_gammas.append(jnp.ones((1, sizes[i + 1]), jnp.float32))
                self.bn_betas.append(jnp.zeros((1, sizes[i + 1]), jnp.float32))

        # self.bn = BatchNorm1d(sizes[-1], affine=False): gamma=1, beta=0.
        self.final_bn_g = jnp.ones((1, sizes[-1]), jnp.float32)
        self.final_bn_b = jnp.zeros((1, sizes[-1]), jnp.float32)

    def forward(self, y1, y2):
        B = y1.shape[0]
        x1 = y1.reshape(B, -1).astype(jnp.float32)
        x2 = y2.reshape(B, -1).astype(jnp.float32)

        # Backbone stand-in (plain linear); both views share weight streaming.
        h1, h2 = dual_linear_bn_relu(x1, x2, self.w_backbone,
                                     self._dummy_g, self._dummy_b,
                                     bn=False, relu=False)

        # Projector hidden layers: Linear -> BN -> ReLU fused in one call.
        n_layers = len(self.proj_ws)
        for i in range(n_layers - 1):
            h1, h2 = dual_linear_bn_relu(h1, h2, self.proj_ws[i],
                                         self.bn_gammas[i], self.bn_betas[i],
                                         bn=True, relu=True)

        # Final projector Linear fused with the affine-free self.bn epilogue
        # (per-view batch stats, matching self.bn(z1)/self.bn(z2)).
        z1n, z2n = dual_linear_bn_relu(h1, h2, self.proj_ws[-1],
                                       self.final_bn_g, self.final_bn_b,
                                       bn=True, relu=False)

        # TODO(synk): torch.distributed.all_reduce(c) -- single-device run,
        # identity; batch_size is derived from the input batch dimension.
        # TODO(synk): the args.evaluate branch returning (z1, z2, loss) is not
        # implemented (raw z1/z2 are consumed inside the fused final layer).
        return barlow_loss(z1n, z2n, self.lambd)


# ----------------------------------------------------------------------------
# Main
# ----------------------------------------------------------------------------
if __name__ == "__main__":
    key = jax.random.PRNGKey(0)
    k_y1, k_y2, k_params = jax.random.split(key, 3)

    # Small shapes (full model uses 2048 features and an 8192-8192-8192
    # projector; the same tiled kernels scale to those sizes).
    B, C, H, W = 2, 4, 16, 16
    feature_dim = 256
    projector_sizes = (256, 256, 256)   # analogue of args.projector
    lambd = 0.0051                      # Barlow Twins default

    y1 = jax.random.normal(k_y1, (B, C, H, W), jnp.float32)
    y2 = jax.random.normal(k_y2, (B, C, H, W), jnp.float32)

    model = BarlowTwinsPallas(k_params, in_dim=C * H * W,
                              feature_dim=feature_dim,
                              projector_sizes=projector_sizes,
                              lambd=lambd)

    loss = model.forward(y1, y2)
    jax.block_until_ready(loss)
    print("KERNEL_OK")
</pallas_src>

<mosaic_0001>
module attributes {stable_mosaic.version = 11 : i64} {
  func.func @_dual_linear_bn_kernel(%arg0: i32, %arg1: i32, %arg2: memref<2x256xf32, #tpu.memory_space<vmem>>, %arg3: memref<2x256xf32, #tpu.memory_space<vmem>>, %arg4: memref<256x128xbf16, #tpu.memory_space<vmem>>, %arg5: memref<1x128xf32, #tpu.memory_space<vmem>>, %arg6: memref<1x128xf32, #tpu.memory_space<vmem>>, %arg7: memref<2x128xf32, #tpu.memory_space<vmem>>, %arg8: memref<2x128xf32, #tpu.memory_space<vmem>>, %arg9: memref<2x128xf32, #tpu.memory_space<vmem>>, %arg10: memref<2x128xf32, #tpu.memory_space<vmem>>) attributes {dimension_semantics = [#tpu.dimension_semantics<parallel>, #tpu.dimension_semantics<arbitrary>], iteration_bounds = array<i64: 2, 4>, scalar_prefetch = 0 : i64, scratch_operands = 2 : i64, tpu.core_type = #tpu.core_type<tc>, window_params = [{transform_indices = @transform_0, window_bounds = array<i64: 2, 256>}, {transform_indices = @transform_1, window_bounds = array<i64: 2, 256>}, {transform_indices = @transform_2, window_bounds = array<i64: 256, 128>}, {transform_indices = @transform_3, window_bounds = array<i64: 1, 128>}, {transform_indices = @transform_4, window_bounds = array<i64: 1, 128>}, {transform_indices = @transform_5, window_bounds = array<i64: 2, 128>}, {transform_indices = @transform_6, window_bounds = array<i64: 2, 128>}]} {
    %c0_i32 = arith.constant 0 : i32
    %0 = arith.cmpi eq, %arg1, %c0_i32 : i32
    %1 = arith.extui %0 : i1 to i32
    %c0_i32_0 = arith.constant 0 : i32
    %2 = arith.cmpi ne, %1, %c0_i32_0 : i32
    scf.if %2 {
      %cst_16 = arith.constant 0.000000e+00 : f32
      %19 = vector.broadcast %cst_16 : f32 to vector<2x128xf32>
      %c0_17 = arith.constant 0 : index
      %c0_18 = arith.constant 0 : index
      %20 = vector.load %arg9[%c0_17, %c0_18] : memref<2x128xf32, #tpu.memory_space<vmem>>, vector<2x128xf32>
      tpu.vector_store %arg9[%c0_17, %c0_18], %19 {strides = array<i32>} : memref<2x128xf32, #tpu.memory_space<vmem>>, vector<2x128xf32>,
      %cst_19 = arith.constant 0.000000e+00 : f32
      %21 = vector.broadcast %cst_19 : f32 to vector<2x128xf32>
      %c0_20 = arith.constant 0 : index
      %c0_21 = arith.constant 0 : index
      %22 = vector.load %arg10[%c0_20, %c0_21] : memref<2x128xf32, #tpu.memory_space<vmem>>, vector<2x128xf32>
      tpu.vector_store %arg10[%c0_20, %c0_21], %21 {strides = array<i32>} : memref<2x128xf32, #tpu.memory_space<vmem>>, vector<2x128xf32>,
    } else {
    }
    %c0 = arith.constant 0 : index
    %c0_1 = arith.constant 0 : index
    %3 = vector.load %arg4[%c0, %c0_1] : memref<256x128xbf16, #tpu.memory_space<vmem>>, vector<256x128xbf16>
    %c0_2 = arith.constant 0 : index
    %c0_3 = arith.constant 0 : index
    %4 = vector.load %arg9[%c0_2, %c0_3] : memref<2x128xf32, #tpu.memory_space<vmem>>, vector<2x128xf32>
    %c0_4 = arith.constant 0 : index
    %c0_5 = arith.constant 0 : index
    %5 = vector.load %arg2[%c0_4, %c0_5] : memref<2x256xf32, #tpu.memory_space<vmem>>, vector<2x256xf32>
    %6 = arith.truncf %5 : vector<2x256xf32> to vector<2x256xbf16>
    %cst = arith.constant dense<0.000000e+00> : vector<2x128xf32>
    %7 = tpu.matmul %6, %3, %cst {dimension_numbers = #tpu.dot_dimension_numbers<[1], [0], [0], [1], [0, 0, 1, 1], [], []>} : vector<2x256xbf16>, vector<256x128xbf16>, vector<2x128xf32> -> vector<2x128xf32>
    %8 = arith.addf %4, %7 : vector<2x128xf32>
    %c0_6 = arith.constant 0 : index
    %c0_7 = arith.constant 0 : index
    %9 = vector.load %arg9[%c0_6, %c0_7] : memref<2x128xf32, #tpu.memory_space<vmem>>, vector<2x128xf32>
    tpu.vector_store %arg9[%c0_6, %c0_7], %8 {strides = array<i32>} : memref<2x128xf32, #tpu.memory_space<vmem>>, vector<2x128xf32>,
    %c0_8 = arith.constant 0 : index
    %c0_9 = arith.constant 0 : index
    %10 = vector.load %arg10[%c0_8, %c0_9] : memref<2x128xf32, #tpu.memory_space<vmem>>, vector<2x128xf32>
    %c0_10 = arith.constant 0 : index
    %c0_11 = arith.constant 0 : index
    %11 = vector.load %arg3[%c0_10, %c0_11] : memref<2x256xf32, #tpu.memory_space<vmem>>, vector<2x256xf32>
    %12 = arith.truncf %11 : vector<2x256xf32> to vector<2x256xbf16>
    %cst_12 = arith.constant dense<0.000000e+00> : vector<2x128xf32>
    %13 = tpu.matmul %12, %3, %cst_12 {dimension_numbers = #tpu.dot_dimension_numbers<[1], [0], [0], [1], [0, 0, 1, 1], [], []>} : vector<2x256xbf16>, vector<256x128xbf16>, vector<2x128xf32> -> vector<2x128xf32>
    %14 = arith.addf %10, %13 : vector<2x128xf32>
    %c0_13 = arith.constant 0 : index
    %c0_14 = arith.constant 0 : index
    %15 = vector.load %arg10[%c0_13, %c0_14] : memref<2x128xf32, #tpu.memory_space<vmem>>, vector<2x128xf32>
    tpu.vector_store %arg10[%c0_13, %c0_14], %14 {strides = array<i32>} : memref<2x128xf32, #tpu.memory_space<vmem>>, vector<2x128xf32>,
    %c3_i32 = arith.constant 3 : i32
    %16 = arith.cmpi eq, %arg1, %c3_i32 : i32
    %17 = arith.extui %16 : i1 to i32
    %c0_i32_15 = arith.constant 0 : i32
    %18 = arith.cmpi ne, %17, %c0_i32_15 : i32
    scf.if %18 {
      %c0_16 = arith.constant 0 : index
      %c0_17 = arith.constant 0 : index
      %19 = vector.load %arg9[%c0_16, %c0_17] : memref<2x128xf32, #tpu.memory_space<vmem>>, vector<2x128xf32>
      %c0_18 = arith.constant 0 : index
      %c0_19 = arith.constant 0 : index
      %20 = vector.load %arg7[%c0_18, %c0_19] : memref<2x128xf32, #tpu.memory_space<vmem>>, vector<2x128xf32>
      tpu.vector_store %arg7[%c0_18, %c0_19], %19 {strides = array<i32>} : memref<2x128xf32, #tpu.memory_space<vmem>>, vector<2x128xf32>,
      %c0_20 = arith.constant 0 : index
      %c0_21 = arith.constant 0 : index
      %21 = vector.load %arg10[%c0_20, %c0_21] : memref<2x128xf32, #tpu.memory_space<vmem>>, vector<2x128xf32>
      %c0_22 = arith.constant 0 : index
      %c0_23 = arith.constant 0 : index
      %22 = vector.load %arg8[%c0_22, %c0_23] : memref<2x128xf32, #tpu.memory_space<vmem>>, vector<2x128xf32>
      tpu.vector_store %arg8[%c0_22, %c0_23], %21 {strides = array<i32>} : memref<2x128xf32, #tpu.memory_space<vmem>>, vector<2x128xf32>,
    } else {
    }
    return
  }
  func.func @transform_0(%arg0: i32, %arg1: i32) -> (i32, i32) {
    %c0_i32 = arith.constant 0 : i32
    %c0_i32_0 = arith.constant 0 : i32
    return %c0_i32, %arg1 : i32, i32
  }
  func.func @transform_1(%arg0: i32, %arg1: i32) -> (i32, i32) {
    %c0_i32 = arith.constant 0 : i32
    %c0_i32_0 = arith.constant 0 : i32
    return %c0_i32, %arg1 : i32, i32
  }
  func.func @transform_2(%arg0: i32, %arg1: i32) -> (i32, i32) {
    %c0_i32 = arith.constant 0 : i32
    return %arg1, %arg0 : i32, i32
  }
  func.func @transform_3(%arg0: i32, %arg1: i32) -> (i32, i32) {
    %c0_i32 = arith.constant 0 : i32
    %c0_i32_0 = arith.constant 0 : i32
    return %c0_i32, %arg0 : i32, i32
  }
  func.func @transform_4(%arg0: i32, %arg1: i32) -> (i32, i32) {
    %c0_i32 = arith.constant 0 : i32
    %c0_i32_0 = arith.constant 0 : i32
    return %c0_i32, %arg0 : i32, i32
  }
  func.func @transform_5(%arg0: i32, %arg1: i32) -> (i32, i32) {
    %c0_i32 = arith.constant 0 : i32
    %c0_i32_0 = arith.constant 0 : i32
    return %c0_i32, %arg0 : i32, i32
  }
  func.func @transform_6(%arg0: i32, %arg1: i32) -> (i32, i32) {
    %c0_i32 = arith.constant 0 : i32
    %c0_i32_0 = arith.constant 0 : i32
    return %c0_i32, %arg0 : i32, i32
  }
}

</mosaic_0001>

<llo_original>
// kernel: tpu_custom_call.1
$region0: #{tpu_custom_call.1}
  #allocation0 [shape = 'u32[]', space=smem, size = 0x4, offset = 0x4, fixed_abs, tag = 'smem constant byte address 0x4 - core index']
  #allocation1 [shape = 'u32[144,128]{1,0:T(1,128)}', space=vmem, size = 0x12000, scoped, tag = 'internal scratch']
  #allocation2 [shape = 'f32[2,128]{1,0:T(2,128)}', space=vmem, size = 0x400, scoped, tag = 'scratch operand']
  #allocation3 [shape = 'f32[2,128]{1,0:T(2,128)}', space=vmem, size = 0x400, scoped, tag = 'scratch operand']
  %s0 = inlined_call_operand.hbm [shape: f32[2,1024], index: 0, kind: input, shape index: {}]
  %s1 = inlined_call_operand.hbm [shape: f32[2,1024], index: 1, kind: input, shape index: {}]
  %s2 = inlined_call_operand.hbm [shape: bf16[1024,256], index: 2, kind: input, shape index: {}]
  %s3 = inlined_call_operand.vmem [shape: f32[1,256], index: 3, kind: input, shape index: {}]
  %s4 = inlined_call_operand.vmem [shape: f32[1,256], index: 4, kind: input, shape index: {}]
  %s5 = inlined_call_operand.hbm [shape: f32[2,256], index: 5, kind: output, shape index: {0}]
  %s6 = inlined_call_operand.hbm [shape: f32[2,256], index: 6, kind: output, shape index: {1}]
  %7 = xla_tuple %s5, %s6
  %s8 = sld [smem:[#allocation0]]
  $region81: #{tpu_custom_call.1} parent=0
    _
  %s10 = ssub.s32 1, %s8
  %s11 = scalar_select 0, %s10, %s8
  $region1: #{tpu_custom_call.1} parent=0
    #allocation4 [shape = 'u8[4096]{0}', space=vmem, size = 0x1000, scoped, tag = 'input window, operand 0']
    #allocation5 [shape = 's32[2]{0}', space=sflag, size = 0x8, scoped, tag = 'scoped memory for tpu_custom_call.1']
    #allocation6 [shape = 's32[2]{0}', space=sflag, size = 0x8, scoped, tag = 'scoped memory for tpu_custom_call.1']
    #allocation7 [shape = 'u8[4096]{0}', space=vmem, size = 0x1000, scoped, tag = 'input window, operand 1']
    #allocation8 [shape = 's32[2]{0}', space=sflag, size = 0x8, scoped, tag = 'scoped memory for tpu_custom_call.1']
    #allocation9 [shape = 'u8[131072]{0}', space=vmem, size = 0x20000, scoped, tag = 'input window, operand 2']
    #allocation10 [shape = 'u8[2048]{0}', space=vmem, size = 0x800, scoped, tag = 'output window, operand 0']
    #allocation11 [shape = 'u8[2048]{0}', space=vmem, size = 0x800, scoped, tag = 'output window, operand 1']
    #allocation12 [shape = 's32[2]{0}', space=sflag, size = 0x8, scoped, tag = 'scoped memory for tpu_custom_call.1']
    %12 = vsyncpa [#allocation5], 0
    %s13 = scalar_lea.sflag [#allocation5], 1
    %14 = vsyncpa %s13, 0
    %15 = vsyncpa [#allocation8], 0
    %s16 = scalar_lea.sflag [#allocation8], 1
    %17 = vsyncpa %s16, 0
    %18 = vsyncpa [#allocation6], 0
    %s19 = scalar_lea.sflag [#allocation6], 1
    %20 = vsyncpa %s19, 0
    %21 = vsyncpa [#allocation12], 0
    %s22 = scalar_lea.sflag [#allocation12], 1
    %23 = vsyncpa %s22, 0
    loop: start=0, step=1, limit=10
    $region2: #{tpu_custom_call.1} parent=1 // loop_pre_header
      _
    $region3: #{tpu_custom_call.1} parent=1 // loop_header
      %s25 = sphi 0, %s29
      %p26 = scmp.ge.s32.totalorder %s25, 10
      %s32 = sphi 0, %s44
      %s33 = sphi 0, %s40
      %s34 = sphi 0, %s32
      %s35 = sphi 0, %s33
      %s36 = sphi 0, %s34
      %s37 = sphi 0, %s35
      %s47 = sphi 0, %s49
      %s50 = sphi 0, %s47
      %s51 = sphi 0, %s50
      %s67 = sphi 0, %s51
      %s73 = sphi 0, %s75
      %s76 = sphi 0, %s73
      %s77 = sphi 0, %s76
      %s93 = sphi 0, %s77
      %s101 = sphi 0, %s103
      %s104 = sphi 0, %s101
      %s105 = sphi 0, %s104
      %s121 = sphi 0, %s105
      %s127 = sphi 0, %s129
      %s130 = sphi 0, %s127
      %s131 = sphi 0, %s130
      %s147 = sphi 0, %s131
      %s153 = sphi 0, %s155
      %s156 = sphi 0, %s153
      %s157 = sphi 0, %s156
      %s173 = sphi 0, %s157
      %s179 = sphi 0, %s181
      %s182 = sphi 0, %s179
      %s183 = sphi 0, %s182
      %s199 = sphi 0, %s183
      %s205 = sphi 0, %s207
      %s208 = sphi 0, %s205
      %s209 = sphi 0, %s208
      %s225 = sphi 0, %s209
    $region4: #{tpu_custom_call.1} parent=1 // loop_header_branch
      %28 = sbr.rel (%p26) target = $region8
    $region5: #{tpu_custom_call.1} parent=1 // loop_body
      %s30 = ssub.s32 %s25, 1
      %s31 = ssub.s32 %s25, 2
      %s38 = sadd.s32 1, %s33
      %p39 = scmp.ge.s32.totalorder %s38, 4
      %s40 = scalar_select %p39, 0, %s38
      %s41 = sadd.s32 1, %s32
      %s42 = scalar_select %p39, %s41, %s32
      %p43 = scmp.ge.s32.totalorder %s42, 2
      %s44 = scalar_select %p43, 0, %s42
      %s45 = ssub.s32 %s33, %s40
      %p46 = scmp.eq.s32.totalorder %s45, 0
      %s48 = sadd.s32 %s47, 1
      %s49 = scalar_select %p46, %s47, %s48
      %p52 = pneg %p46
      %p53 = scmp.eq.s32.totalorder %s25, 7
      %p54 = por %p52, %p53
      %p55 = scmp.ne.s32.totalorder %s47, %s50
      %p56 = scmp.eq.s32.totalorder %s25, 0
      %p57 = por %p55, %p56
      %p58 = scmp.ne.s32.totalorder %s47, %s50
      %p59 = scmp.eq.s32.totalorder %s30, 7
      %p60 = por %p58, %p59
      %p61 = scmp.ne.s32.totalorder %s50, %s51
      %p62 = scmp.eq.s32.totalorder %s30, 0
      %p63 = por %p61, %p62
      %p64 = scmp.ne.s32.totalorder %s50, %s51
      %p65 = scmp.eq.s32.totalorder %s31, 7
      %p66 = por %p64, %p65
      %p68 = scmp.ne.s32.totalorder %s51, %s67
      %p69 = scmp.eq.s32.totalorder %s31, 0
      %p70 = por %p68, %p69
      %s71 = ssub.s32 %s33, %s40
      %p72 = scmp.eq.s32.totalorder %s71, 0
      %s74 = sadd.s32 %s73, 1
      %s75 = scalar_select %p72, %s73, %s74
      %p78 = pneg %p72
      %p79 = scmp.eq.s32.totalorder %s25, 7
      %p80 = por %p78, %p79
      %p81 = scmp.ne.s32.totalorder %s73, %s76
      %p82 = scmp.eq.s32.totalorder %s25, 0
      %p83 = por %p81, %p82
      %p84 = scmp.ne.s32.totalorder %s73, %s76
      %p85 = scmp.eq.s32.totalorder %s30, 7
      %p86 = por %p84, %p85
      %p87 = scmp.ne.s32.totalorder %s76, %s77
      %p88 = scmp.eq.s32.totalorder %s30, 0
      %p89 = por %p87, %p88
      %p90 = scmp.ne.s32.totalorder %s76, %s77
      %p91 = scmp.eq.s32.totalorder %s31, 7
      %p92 = por %p90, %p91
      %p94 = scmp.ne.s32.totalorder %s77, %s93
      %p95 = scmp.eq.s32.totalorder %s31, 0
      %p96 = por %p94, %p95
      %s97 = ssub.s32 %s33, %s40
      %s98 = ssub.s32 %s32, %s44
      %s99 = sor.u32 %s97, %s98
      %p100 = scmp.eq.s32.totalorder %s99, 0
      %s102 = sadd.s32 %s101, 1
      %s103 = scalar_select %p100, %s101, %s102
      %p106 = pneg %p100
      %p107 = scmp.eq.s32.totalorder %s25, 7
      %p108 = por %p106, %p107
      %p109 = scmp.ne.s32.totalorder %s101, %s104
      %p110 = scmp.eq.s32.totalorder %s25, 0
      %p111 = por %p109, %p110
      %p112 = scmp.ne.s32.totalorder %s101, %s104
      %p113 = scmp.eq.s32.totalorder %s30, 7
      %p114 = por %p112, %p113
      %p115 = scmp.ne.s32.totalorder %s104, %s105
      %p116 = scmp.eq.s32.totalorder %s30, 0
      %p117 = por %p115, %p116
      %p118 = scmp.ne.s32.totalorder %s104, %s105
      %p119 = scmp.eq.s32.totalorder %s31, 7
      %p120 = por %p118, %p119
      %p122 = scmp.ne.s32.totalorder %s105, %s121
      %p123 = scmp.eq.s32.totalorder %s31, 0
      %p124 = por %p122, %p123
      %s125 = ssub.s32 %s32, %s44
      %p126 = scmp.eq.s32.totalorder %s125, 0
      %s128 = sadd.s32 %s127, 1
      %s129 = scalar_select %p126, %s127, %s128
      %p132 = pneg %p126
      %p133 = scmp.eq.s32.totalorder %s25, 7
      %p134 = por %p132, %p133
      %p135 = scmp.ne.s32.totalorder %s127, %s130
      %p136 = scmp.eq.s32.totalorder %s25, 0
      %p137 = por %p135, %p136
      %p138 = scmp.ne.s32.totalorder %s127, %s130
      %p139 = scmp.eq.s32.totalorder %s30, 7
      %p140 = por %p138, %p139
      %p141 = scmp.ne.s32.totalorder %s130, %s131
      %p142 = scmp.eq.s32.totalorder %s30, 0
      %p143 = por %p141, %p142
      %p144 = scmp.ne.s32.totalorder %s130, %s131
      %p145 = scmp.eq.s32.totalorder %s31, 7
      %p146 = por %p144, %p145
      %p148 = scmp.ne.s32.totalorder %s131, %s147
      %p149 = scmp.eq.s32.totalorder %s31, 0
      %p150 = por %p148, %p149
      %s151 = ssub.s32 %s32, %s44
      %p152 = scmp.eq.s32.totalorder %s151, 0
      %s154 = sadd.s32 %s153, 1
      %s155 = scalar_select %p152, %s153, %s154
      %p158 = pneg %p152
      %p159 = scmp.eq.s32.totalorder %s25, 7
      %p160 = por %p158, %p159
      %p161 = scmp.ne.s32.totalorder %s153, %s156
      %p162 = scmp.eq.s32.totalorder %s25, 0
      %p163 = por %p161, %p162
      %p164 = scmp.ne.s32.totalorder %s153, %s156
      %p165 = scmp.eq.s32.totalorder %s30, 7
      %p166 = por %p164, %p165
      %p167 = scmp.ne.s32.totalorder %s156, %s157
      %p168 = scmp.eq.s32.totalorder %s30, 0
      %p169 = por %p167, %p168
      %p170 = scmp.ne.s32.totalorder %s156, %s157
      %p171 = scmp.eq.s32.totalorder %s31, 7
      %p172 = por %p170, %p171
      %p174 = scmp.ne.s32.totalorder %s157, %s173
      %p175 = scmp.eq.s32.totalorder %s31, 0
      %p176 = por %p174, %p175
      %s177 = ssub.s32 %s32, %s44
      %p178 = scmp.eq.s32.totalorder %s177, 0
      %s180 = sadd.s32 %s179, 1
      %s181 = scalar_select %p178, %s179, %s180
      %p184 = pneg %p178
      %p185 = scmp.eq.s32.totalorder %s25, 7
      %p186 = por %p184, %p185
      %p187 = scmp.ne.s32.totalorder %s179, %s182
      %p188 = scmp.eq.s32.totalorder %s25, 0
      %p189 = por %p187, %p188
      %p190 = scmp.ne.s32.totalorder %s179, %s182
      %p191 = scmp.eq.s32.totalorder %s30, 7
      %p192 = por %p190, %p191
      %p193 = scmp.ne.s32.totalorder %s182, %s183
      %p194 = scmp.eq.s32.totalorder %s30, 0
      %p195 = por %p193, %p194
      %p196 = scmp.ne.s32.totalorder %s182, %s183
      %p197 = scmp.eq.s32.totalorder %s31, 7
      %p198 = por %p196, %p197
      %p200 = scmp.ne.s32.totalorder %s183, %s199
      %p201 = scmp.eq.s32.totalorder %s31, 0
      %p202 = por %p200, %p201
      %s203 = ssub.s32 %s32, %s44
      %p204 = scmp.eq.s32.totalorder %s203, 0
      %s206 = sadd.s32 %s205, 1
      %s207 = scalar_select %p204, %s205, %s206
      %p210 = pneg %p204
      %p211 = scmp.eq.s32.totalorder %s25, 7
      %p212 = por %p210, %p211
      %p213 = scmp.ne.s32.totalorder %s205, %s208
      %p214 = scmp.eq.s32.totalorder %s25, 0
      %p215 = por %p213, %p214
      %p216 = scmp.ne.s32.totalorder %s205, %s208
      %p217 = scmp.eq.s32.totalorder %s30, 7
      %p218 = por %p216, %p217
      %p219 = scmp.ne.s32.totalorder %s208, %s209
      %p220 = scmp.eq.s32.totalorder %s30, 0
      %p221 = por %p219, %p220
      %p222 = scmp.ne.s32.totalorder %s208, %s209
      %p223 = scmp.eq.s32.totalorder %s31, 7
      %p224 = por %p222, %p223
      %p226 = scmp.ne.s32.totalorder %s209, %s225
      %p227 = scmp.eq.s32.totalorder %s31, 0
      %p228 = por %p226, %p227
      %p229 = scmp.le.s32.totalorder 1, %s25
      %p230 = scmp.lt.s32.totalorder %s25, 9
      %p231 = pnand %p229, %p230
      %p232 = pneg %p231
      // Predicated region
      $region9: #{tpu_custom_call.1} parent=5 // pred_check
        _
      $region10: #{tpu_custom_call.1} parent=5 // pred_check_branch
        %234 = sbr.rel (%p231) target = $region12
      $region11: #{tpu_custom_call.1} parent=5 // pred_region
        %s235 = ssub.s32 %s25, 1
      $region12: #{tpu_custom_call.1} parent=5 // pred_fallthru
        _
      %p236 = scmp.lt.s32.totalorder %s25, 8
      // Predicated region
      $region13: #{tpu_custom_call.1} parent=5 // pred_check
        %p237 = pneg %p236
      $region14: #{tpu_custom_call.1} parent=5 // pred_check_branch
        %239 = sbr.rel (%p237) target = $region16
      $region15: #{tpu_custom_call.1} parent=5 // pred_region
        // Predicated region
        $region17: #{tpu_custom_call.1} parent=15 // pred_check
          %p240 = pneg %p57
        $region18: #{tpu_custom_call.1} parent=15 // pred_check_branch
          %242 = sbr.rel (%p240) target = $region20
        $region19: #{tpu_custom_call.1} parent=15 // pred_region
          %s243 = sand.u32 %s47, 1
          %s244 = scalar_lea.sflag [#allocation5], %s243
          %s245 = sand.u32 %s47, 1
          %s246 = smul.addr %s245, 4
          %s247 = scalar_lea.vmem [#allocation4], %s246
          %s248 = smul.u32 2, %s33
          %s250 = ssub.s32 64, 64
          %251 = vsyncadd %s244, %s250
          %s252 = smul.addr %s248, 32
          %s253 = scalar_lea.hbm %s0, %s252
          %s255 = sshll.u32 %s247, 4
          %s256 = int_to_ptr.vmem [resolvable:$true] %s255
          %258 = dma.hbm_to_vmem [thread:$0]  %s253, 64, %s256, %s244
        $region20: #{tpu_custom_call.1} parent=15 // pred_fallthru
          _
        // Predicated region
        $region21: #{tpu_custom_call.1} parent=15 // pred_check
          %p259 = pneg %p83
        $region22: #{tpu_custom_call.1} parent=15 // pred_check_branch
          %261 = sbr.rel (%p259) target = $region24
        $region23: #{tpu_custom_call.1} parent=15 // pred_region
          %s262 = sand.u32 %s25, 1
          %s263 = scalar_lea.sflag [#allocation8], %s262
          %s264 = sand.u32 %s73, 1
          %s265 = smul.addr %s264, 4
          %s266 = scalar_lea.vmem [#allocation7], %s265
          %s267 = smul.u32 2, %s33
          %s269 = ssub.s32 64, 64
          %270 = vsyncadd %s263, %s269
          %s271 = smul.addr %s267, 32
          %s272 = scalar_lea.hbm %s1, %s271
          %s274 = sshll.u32 %s266, 4
          %s275 = int_to_ptr.vmem [resolvable:$true] %s274
          %277 = dma.hbm_to_vmem [thread:$0]  %s272, 64, %s275, %s263
        $region24: #{tpu_custom_call.1} parent=15 // pred_fallthru
          _
        // Predicated region
        $region25: #{tpu_custom_call.1} parent=15 // pred_check
          %p278 = pneg %p111
        $region26: #{tpu_custom_call.1} parent=15 // pred_check_branch
          %280 = sbr.rel (%p278) target = $region28
        $region27: #{tpu_custom_call.1} parent=15 // pred_region
          %s281 = sand.u32 %s25, 1
          %s282 = scalar_lea.sflag [#allocation8], %s281
          %s283 = sand.u32 %s101, 1
          %s284 = smul.addr %s283, 128
          %s285 = scalar_lea.vmem [#allocation9], %s284
          %s286 = smul.u32 32, %s33
          %s288 = ssub.s32 2048, 2048
          %289 = vsyncadd %s282, %s288
          %s290 = smul.addr %s286, 2
          %s291 = sadd.s32 %s32, %s290
          %s292 = smul.addr %s291, 64
          %s293 = scalar_lea.hbm %s2, %s292
          %s294 = sshll.u32 %s285, 4
          %s295 = int_to_ptr.vmem [resolvable:$true] %s294
          %300 = dma.hbm_to_vmem [thread:$0]  %s293, 2048, %s295, %s282, 128, 64, 4
        $region28: #{tpu_custom_call.1} parent=15 // pred_fallthru
          _
        // Predicated region
        $region29: #{tpu_custom_call.1} parent=15 // pred_check
          %p301 = pneg %p137
        $region30: #{tpu_custom_call.1} parent=15 // pred_check_branch
          %303 = sbr.rel (%p301) target = $region32
        $region31: #{tpu_custom_call.1} parent=15 // pred_region
          %p304 = scmp.lt.s32.totalorder %s32, 1
          %s305 = scalar_select %p304, %s32, 1
          %s306 = scalar_lea.vmem %s3, %s305
        $region32: #{tpu_custom_call.1} parent=15 // pred_fallthru
          _
        // Predicated region
        $region33: #{tpu_custom_call.1} parent=15 // pred_check
          %p307 = pneg %p163
        $region34: #{tpu_custom_call.1} parent=15 // pred_check_branch
          %309 = sbr.rel (%p307) target = $region36
        $region35: #{tpu_custom_call.1} parent=15 // pred_region
          %p310 = scmp.lt.s32.totalorder %s32, 1
          %s311 = scalar_select %p310, %s32, 1
          %s312 = scalar_lea.vmem %s4, %s311
        $region36: #{tpu_custom_call.1} parent=15 // pred_fallthru
          _
      $region16: #{tpu_custom_call.1} parent=5 // pred_fallthru
        _
      %p313 = scmp.le.s32.totalorder 1, %s25
      %p314 = scmp.lt.s32.totalorder %s25, 9
      %p315 = pnand %p313, %p314
      %p316 = pneg %p315
      // Predicated region
      $region37: #{tpu_custom_call.1} parent=5 // pred_check
        _
      $region38: #{tpu_custom_call.1} parent=5 // pred_check_branch
        %318 = sbr.rel (%p315) target = $region40
      $region39: #{tpu_custom_call.1} parent=5 // pred_region
        %s319 = ssub.s32 %s25, 1
        %s320 = sand.u32 %s50, 1
        %s321 = scalar_lea.sflag [#allocation5], %s320
        %s322 = sand.u32 %s50, 1
        %s323 = smul.addr %s322, 4
        %s324 = scalar_lea.vmem [#allocation4], %s323
        // Predicated region
        $region41: #{tpu_custom_call.1} parent=39 // pred_check
          %p325 = pneg %p63
        $region42: #{tpu_custom_call.1} parent=39 // pred_check_branch
          %327 = sbr.rel (%p325) target = $region44
        $region43: #{tpu_custom_call.1} parent=39 // pred_region
          %328 = dma.done %s321, 64
        $region44: #{tpu_custom_call.1} parent=39 // pred_fallthru
          _
        %s329 = sand.u32 %s30, 1
        %s330 = scalar_lea.sflag [#allocation8], %s329
        %s331 = sand.u32 %s76, 1
        %s332 = smul.addr %s331, 4
        %s333 = scalar_lea.vmem [#allocation7], %s332
        // Predicated region
        $region45: #{tpu_custom_call.1} parent=39 // pred_check
          %p334 = pneg %p89
        $region46: #{tpu_custom_call.1} parent=39 // pred_check_branch
          %336 = sbr.rel (%p334) target = $region48
        $region47: #{tpu_custom_call.1} parent=39 // pred_region
          %337 = dma.done %s330, 64
        $region48: #{tpu_custom_call.1} parent=39 // pred_fallthru
          _
        %s338 = sand.u32 %s30, 1
        %s339 = scalar_lea.sflag [#allocation8], %s338
        %s340 = sand.u32 %s104, 1
        %s341 = smul.addr %s340, 128
        %s342 = scalar_lea.vmem [#allocation9], %s341
        // Predicated region
        $region49: #{tpu_custom_call.1} parent=39 // pred_check
          %p343 = pneg %p117
        $region50: #{tpu_custom_call.1} parent=39 // pred_check_branch
          %345 = sbr.rel (%p343) target = $region52
        $region51: #{tpu_custom_call.1} parent=39 // pred_region
          %346 = dma.done %s339, 2048
        $region52: #{tpu_custom_call.1} parent=39 // pred_fallthru
          _
        %s347 = sand.u32 %s50, 1
        %s348 = scalar_lea.sflag [#allocation5], %s347
        %s349 = sand.u32 %s50, 1
        %s350 = smul.addr %s349, 4
        %s351 = scalar_lea.vmem [#allocation4], %s350
        %p352 = pneg %p63
        %p353 = pneg %p60
        %s354 = sand.u32 %s30, 1
        %s355 = scalar_lea.sflag [#allocation8], %s354
        %s356 = sand.u32 %s76, 1
        %s357 = smul.addr %s356, 4
        %s358 = scalar_lea.vmem [#allocation7], %s357
        %p359 = pneg %p89
        %p360 = pneg %p86
        %s361 = sand.u32 %s30, 1
        %s362 = scalar_lea.sflag [#allocation8], %s361
        %s363 = sand.u32 %s104, 1
        %s364 = smul.addr %s363, 128
        %s365 = scalar_lea.vmem [#allocation9], %s364
        %p366 = pneg %p117
        %p367 = pneg %p114
        %p368 = scmp.lt.s32.totalorder %s34, 1
        %s369 = scalar_select %p368, %s34, 1
        %s370 = scalar_lea.vmem %s3, %s369
        %p371 = pneg %p143
        %p372 = pneg %p140
        %p373 = scmp.lt.s32.totalorder %s34, 1
        %s374 = scalar_select %p373, %s34, 1
        %s375 = scalar_lea.vmem %s4, %s374
        %p376 = pneg %p169
        %p377 = pneg %p166
        %p378 = pneg %p195
        %p379 = pneg %p192
        %s380 = sand.u32 %s182, 1
        %s381 = scalar_lea.sflag [#allocation6], %s380
        %s382 = sand.u32 %s182, 1
        %s383 = smul.addr %s382, 2
        %s384 = scalar_lea.vmem [#allocation10], %s383
        %p385 = pneg %p221
        %p386 = pneg %p218
        %s387 = sand.u32 %s208, 1
        %s388 = scalar_lea.sflag [#allocation12], %s387
        %s389 = sand.u32 %s208, 1
        %s390 = smul.addr %s389, 2
        %s391 = scalar_lea.vmem [#allocation11], %s390
        %s392 = smul.u32 2, %s35
        %s393 = smul.u32 2, %s35
        %s394 = smul.u32 32, %s35
        %p395 = scmp.lt.s32.totalorder %s34, 1
        %s396 = scalar_select %p395, %s34, 1
        %s397 = scalar_lea.vmem %s3, %s396
        %p398 = scmp.lt.s32.totalorder %s34, 1
        %s399 = scalar_select %p398, %s34, 1
        %s400 = scalar_lea.vmem %s4, %s399
        %p402 = scmp.eq.s32.totalorder %s35, 0
        // Predicated region
        $region53: #{tpu_custom_call.1} parent=39 // pred_check
          %p403 = pneg %p402
        $region54: #{tpu_custom_call.1} parent=39 // pred_check_branch
          %405 = sbr.rel (%p403) target = $region56
        $region55: #{tpu_custom_call.1} parent=39 // pred_region
          %406 = vst [vmem:[#allocation2] sm:$0x3] 0.0
          %407 = vst [vmem:[#allocation3] sm:$0x3] 0.0
        $region56: #{tpu_custom_call.1} parent=39 // pred_fallthru
          _
        %v408 = vld [vmem:[%s342] sm:$0xf]
        %v409 = vld [vmem:[%s342 + $0x4] sm:$0xf]
        %v410 = vld [vmem:[%s342 + $0x8] sm:$0xf]
        %v411 = vld [vmem:[%s342 + $0xc] sm:$0xf]
        %v412 = vld [vmem:[%s342 + $0x10] sm:$0xf]
        %v413 = vld [vmem:[%s342 + $0x14] sm:$0xf]
        %v414 = vld [vmem:[%s342 + $0x18] sm:$0xf]
        %v415 = vld [vmem:[%s342 + $0x1c] sm:$0xf]
        %v416 = vld [vmem:[%s342 + $0x20] sm:$0xf]
        %v417 = vld [vmem:[%s342 + $0x24] sm:$0xf]
        %v418 = vld [vmem:[%s342 + $0x28] sm:$0xf]
        %v419 = vld [vmem:[%s342 + $0x2c] sm:$0xf]
        %v420 = vld [vmem:[%s342 + $0x30] sm:$0xf]
        %v421 = vld [vmem:[%s342 + $0x34] sm:$0xf]
        %v422 = vld [vmem:[%s342 + $0x38] sm:$0xf]
        %v423 = vld [vmem:[%s342 + $0x3c] sm:$0xf]
        %v424 = vld [vmem:[%s342 + $0x40] sm:$0xf]
        %v425 = vld [vmem:[%s342 + $0x44] sm:$0xf]
        %v426 = vld [vmem:[%s342 + $0x48] sm:$0xf]
        %v427 = vld [vmem:[%s342 + $0x4c] sm:$0xf]
        %v428 = vld [vmem:[%s342 + $0x50] sm:$0xf]
        %v429 = vld [vmem:[%s342 + $0x54] sm:$0xf]
        %v430 = vld [vmem:[%s342 + $0x58] sm:$0xf]
        %v431 = vld [vmem:[%s342 + $0x5c] sm:$0xf]
        %v432 = vld [vmem:[%s342 + $0x60] sm:$0xf]
        %v433 = vld [vmem:[%s342 + $0x64] sm:$0xf]
        %v434 = vld [vmem:[%s342 + $0x68] sm:$0xf]
        %v435 = vld [vmem:[%s342 + $0x6c] sm:$0xf]
        %v436 = vld [vmem:[%s342 + $0x70] sm:$0xf]
        %v437 = vld [vmem:[%s342 + $0x74] sm:$0xf]
        %v438 = vld [vmem:[%s342 + $0x78] sm:$0xf]
        %v439 = vld [vmem:[%s342 + $0x7c] sm:$0xf]
        %v440 = vld [vmem:[#allocation2] sm:$0x3]
        %v441 = vld [vmem:[%s324] sm:$0xf]
        %v444 = vunpack.c.l.s4 1983009808
        %v445 = vunpack.c.0.s8 %v444
        %v446 = vlaneseq
        %v447 = vshrl.u32 %v446, 7
        %v448 = vsub.s32 %v445, %v447
        %v449 = vrot.slane %v441, %v448
        %v450 = vcombine.high %v449, %v449
        %v453 = vpack.c.bf16 %v449, %v449
        %v454 = vpack.c.bf16 %v450, %v450
        %v487 = vunpack.c.l.b16 %v408
        %v488 = vunpack.c.l.b16 %v409
        %v489 = vunpack.c.l.b16 %v410
        %v490 = vunpack.c.l.b16 %v411
        %v491 = vunpack.c.l.b16 %v412
        %v492 = vunpack.c.l.b16 %v413
        %v493 = vunpack.c.l.b16 %v414
        %v494 = vunpack.c.l.b16 %v415
        %v495 = vunpack.c.l.b16 %v416
        %v496 = vunpack.c.l.b16 %v417
        %v497 = vunpack.c.l.b16 %v418
        %v498 = vunpack.c.l.b16 %v419
        %v499 = vunpack.c.l.b16 %v420
        %v500 = vunpack.c.l.b16 %v421
        %v501 = vunpack.c.l.b16 %v422
        %v502 = vunpack.c.l.b16 %v423
        %v503 = vunpack.c.l.b16 %v424
        %v504 = vunpack.c.l.b16 %v425
        %v505 = vunpack.c.l.b16 %v426
        %v506 = vunpack.c.l.b16 %v427
        %v507 = vunpack.c.l.b16 %v428
        %v508 = vunpack.c.l.b16 %v429
        %v509 = vunpack.c.l.b16 %v430
        %v510 = vunpack.c.l.b16 %v431
        %v511 = vunpack.c.l.b16 %v432
        %v512 = vunpack.c.l.b16 %v433
        %v513 = vunpack.c.l.b16 %v434
        %v514 = vunpack.c.l.b16 %v435
        %v515 = vunpack.c.l.b16 %v436
        %v516 = vunpack.c.l.b16 %v437
        %v517 = vunpack.c.l.b16 %v438
        %v518 = vunpack.c.l.b16 %v439
        %v519 = vpack.c.b16 %v488, %v487
        %v520 = vpack.c.b16 %v490, %v489
        %v521 = vpack.c.b16 %v492, %v491
        %v522 = vpack.c.b16 %v494, %v493
        %v523 = vpack.c.b16 %v496, %v495
        %v524 = vpack.c.b16 %v498, %v497
        %v525 = vpack.c.b16 %v500, %v499
        %v526 = vpack.c.b16 %v502, %v501
        %v527 = vpack.c.b16 %v504, %v503
        %v528 = vpack.c.b16 %v506, %v505
        %v529 = vpack.c.b16 %v508, %v507
        %v530 = vpack.c.b16 %v510, %v509
        %v531 = vpack.c.b16 %v512, %v511
        %v532 = vpack.c.b16 %v514, %v513
        %v533 = vpack.c.b16 %v516, %v515
        %v534 = vpack.c.b16 %v518, %v517
        %551 = vmatprep.subr.bf16.mxu0 0
        %552 = vmatpush1.bf16.msra.mxu0 %v519
        %553 = vmatprep.subr.bf16.mxu0 0
        %554 = vmatpush1.bf16.msra.mxu0 %v520
        %555 = vmatprep.subr.bf16.mxu0 0
        %556 = vmatpush1.bf16.msra.mxu0 %v521
        %557 = vmatprep.subr.bf16.mxu0 0
        %558 = vmatpush1.bf16.msra.mxu0 %v522
        %559 = vmatprep.subr.bf16.mxu0 0
        %560 = vmatpush1.bf16.msra.mxu0 %v523
        %561 = vmatprep.subr.bf16.mxu0 0
        %562 = vmatpush1.bf16.msra.mxu0 %v524
        %563 = vmatprep.subr.bf16.mxu0 0
        %564 = vmatpush1.bf16.msra.mxu0 %v525
        %565 = vmatprep.subr.bf16.mxu0 0
        %566 = vmatpush1.bf16.msra.mxu0 %v526
        %567 = vmatprep.subr.bf16.mxu0 0
        %568 = vmatpush1.bf16.msra.mxu0 %v527
        %569 = vmatprep.subr.bf16.mxu0 0
        %570 = vmatpush1.bf16.msra.mxu0 %v528
        %571 = vmatprep.subr.bf16.mxu0 0
        %572 = vmatpush1.bf16.msra.mxu0 %v529
        %573 = vmatprep.subr.bf16.mxu0 0
        %574 = vmatpush1.bf16.msra.mxu0 %v530
        %575 = vmatprep.subr.bf16.mxu0 0
        %576 = vmatpush1.bf16.msra.mxu0 %v531
        %577 = vmatprep.subr.bf16.mxu0 0
        %578 = vmatpush1.bf16.msra.mxu0 %v532
        %579 = vmatprep.subr.bf16.mxu0 0
        %580 = vmatpush1.bf16.msra.mxu0 %v533
        %581 = vmatprep.subr.bf16.mxu0 0
        %582 = vmatpush1.bf16.msra.mxu0 %v534
        %583 = vmatprep.mubr.bf16.mxu0 %v454
        %584 = vmatmul.mubr.bf16.gmra.mrb[0].mxu0 %v453
        %v585 = vpop.f32.mrb[0].mxu0
        %v586 = vadd.f32 0.0, %v585
        %v587 = vpop.f32.mrb[0].mxu0
        %v588 = vpop.f32.mrb[0].mxu0
        %v589 = vpop.f32.mrb[0].mxu0
        %590 = vdwg.mxu0
        %v591 = vadd.f32 %v440, %v586
        %592 = vst [vmem:[#allocation2] sm:$0x3] %v591
        %v593 = vld [vmem:[#allocation3] sm:$0x3]
        %v594 = vld [vmem:[%s333] sm:$0xf]
        %v597 = vunpack.c.l.s4 1983009808
        %v598 = vunpack.c.0.s8 %v597
        %v599 = vlaneseq
        %v600 = vshrl.u32 %v599, 7
        %v601 = vsub.s32 %v598, %v600
        %v602 = vrot.slane %v594, %v601
        %v603 = vcombine.high %v602, %v602
        %v606 = vpack.c.bf16 %v602, %v602
        %v607 = vpack.c.bf16 %v603, %v603
        %608 = vmatprep.subr.bf16.mxu0 0
        %609 = vmatpush1.bf16.msra.mxu0 %v519
        %610 = vmatprep.subr.bf16.mxu0 0
        %611 = vmatpush1.bf16.msra.mxu0 %v520
        %612 = vmatprep.subr.bf16.mxu0 0
        %613 = vmatpush1.bf16.msra.mxu0 %v521
        %614 = vmatprep.subr.bf16.mxu0 0
        %615 = vmatpush1.bf16.msra.mxu0 %v522
        %616 = vmatprep.subr.bf16.mxu0 0
        %617 = vmatpush1.bf16.msra.mxu0 %v523
        %618 = vmatprep.subr.bf16.mxu0 0
        %619 = vmatpush1.bf16.msra.mxu0 %v524
        %620 = vmatprep.subr.bf16.mxu0 0
        %621 = vmatpush1.bf16.msra.mxu0 %v525
        %622 = vmatprep.subr.bf16.mxu0 0
        %623 = vmatpush1.bf16.msra.mxu0 %v526
        %624 = vmatprep.subr.bf16.mxu0 0
        %625 = vmatpush1.bf16.msra.mxu0 %v527
        %626 = vmatprep.subr.bf16.mxu0 0
        %627 = vmatpush1.bf16.msra.mxu0 %v528
        %628 = vmatprep.subr.bf16.mxu0 0
        %629 = vmatpush1.bf16.msra.mxu0 %v529
        %630 = vmatprep.subr.bf16.mxu0 0
        %631 = vmatpush1.bf16.msra.mxu0 %v530
        %632 = vmatprep.subr.bf16.mxu0 0
        %633 = vmatpush1.bf16.msra.mxu0 %v531
        %634 = vmatprep.subr.bf16.mxu0 0
        %635 = vmatpush1.bf16.msra.mxu0 %v532
        %636 = vmatprep.subr.bf16.mxu0 0
        %637 = vmatpush1.bf16.msra.mxu0 %v533
        %638 = vmatprep.subr.bf16.mxu0 0
        %639 = vmatpush1.bf16.msra.mxu0 %v534
        %640 = vmatprep.mubr.bf16.mxu0 %v607
        %641 = vmatmul.mubr.bf16.gmra.mrb[0].mxu0 %v606
        %v642 = vpop.f32.mrb[0].mxu0
        %v643 = vadd.f32 0.0, %v642
        %v644 = vpop.f32.mrb[0].mxu0
        %v645 = vpop.f32.mrb[0].mxu0
        %v646 = vpop.f32.mrb[0].mxu0
        %647 = vdwg.mxu0
        %v648 = vadd.f32 %v593, %v643
        %649 = vst [vmem:[#allocation3] sm:$0x3] %v648
        %p650 = scmp.eq.s32.totalorder %s35, 3
        // Predicated region
        $region57: #{tpu_custom_call.1} parent=39 // pred_check
          %p651 = pneg %p650
        $region58: #{tpu_custom_call.1} parent=39 // pred_check_branch
          %653 = sbr.rel (%p651) target = $region60
        $region59: #{tpu_custom_call.1} parent=39 // pred_region
          %v654 = vld [vmem:[#allocation2] sm:$0x3]
          %655 = vst [vmem:[%s384] sm:$0x3] %v654
          %v656 = vld [vmem:[#allocation3] sm:$0x3]
          %657 = vst [vmem:[%s391] sm:$0x3] %v656
        $region60: #{tpu_custom_call.1} parent=39 // pred_fallthru
          _
        %s658 = sand.u32 %s182, 1
        %s659 = scalar_lea.sflag [#allocation6], %s658
        %s660 = sand.u32 %s182, 1
        %s661 = smul.addr %s660, 2
        %s662 = scalar_lea.vmem [#allocation10], %s661
        %s663 = sand.u32 %s208, 1
        %s664 = scalar_lea.sflag [#allocation12], %s663
        %s665 = sand.u32 %s208, 1
        %s666 = smul.addr %s665, 2
        %s667 = scalar_lea.vmem [#allocation11], %s666
        // Predicated region
        $region61: #{tpu_custom_call.1} parent=39 // pred_check
          %p668 = pneg %p192
        $region62: #{tpu_custom_call.1} parent=39 // pred_check_branch
          %670 = sbr.rel (%p668) target = $region64
        $region63: #{tpu_custom_call.1} parent=39 // pred_region
          %s672 = ssub.s32 32, 32
          %673 = vsyncadd %s659, %s672
          %s674 = smul.addr %s34, 32
          %s675 = scalar_lea.hbm %s5, %s674
          %s677 = sshll.u32 %s662, 4
          %s678 = int_to_ptr.vmem [resolvable:$true] %s677
          %680 = dma.vmem_to_hbm [thread:$0]  %s678, 32, %s675, %s659
        $region64: #{tpu_custom_call.1} parent=39 // pred_fallthru
          _
        // Predicated region
        $region65: #{tpu_custom_call.1} parent=39 // pred_check
          %p681 = pneg %p218
        $region66: #{tpu_custom_call.1} parent=39 // pred_check_branch
          %683 = sbr.rel (%p681) target = $region68
        $region67: #{tpu_custom_call.1} parent=39 // pred_region
          %s685 = ssub.s32 32, 32
          %686 = vsyncadd %s664, %s685
          %s687 = smul.addr %s34, 32
          %s688 = scalar_lea.hbm %s6, %s687
          %s690 = sshll.u32 %s667, 4
          %s691 = int_to_ptr.vmem [resolvable:$true] %s690
          %693 = dma.vmem_to_hbm [thread:$0]  %s691, 32, %s688, %s664
        $region68: #{tpu_custom_call.1} parent=39 // pred_fallthru
          _
      $region40: #{tpu_custom_call.1} parent=5 // pred_fallthru
        _
      %p694 = scmp.le.s32.totalorder 2, %s25
      // Predicated region
      $region69: #{tpu_custom_call.1} parent=5 // pred_check
        %p695 = pneg %p694
      $region70: #{tpu_custom_call.1} parent=5 // pred_check_branch
        %697 = sbr.rel (%p695) target = $region72
      $region71: #{tpu_custom_call.1} parent=5 // pred_region
        %s698 = ssub.s32 %s25, 2
        // Predicated region
        $region73: #{tpu_custom_call.1} parent=71 // pred_check
          %p699 = pneg %p198
        $region74: #{tpu_custom_call.1} parent=71 // pred_check_branch
          %701 = sbr.rel (%p699) target = $region76
        $region75: #{tpu_custom_call.1} parent=71 // pred_region
          %s702 = sand.u32 %s183, 1
          %s703 = scalar_lea.sflag [#allocation6], %s702
          %s704 = sand.u32 %s183, 1
          %s705 = smul.addr %s704, 2
          %s706 = scalar_lea.vmem [#allocation10], %s705
          %707 = dma.done %s703, 32
        $region76: #{tpu_custom_call.1} parent=71 // pred_fallthru
          _
        // Predicated region
        $region77: #{tpu_custom_call.1} parent=71 // pred_check
          %p708 = pneg %p224
        $region78: #{tpu_custom_call.1} parent=71 // pred_check_branch
          %710 = sbr.rel (%p708) target = $region80
        $region79: #{tpu_custom_call.1} parent=71 // pred_region
          %s711 = sand.u32 %s209, 1
          %s712 = scalar_lea.sflag [#allocation12], %s711
          %s713 = sand.u32 %s209, 1
          %s714 = smul.addr %s713, 2
          %s715 = scalar_lea.vmem [#allocation11], %s714
          %716 = dma.done %s712, 32
        $region80: #{tpu_custom_call.1} parent=71 // pred_fallthru
          _
      $region72: #{tpu_custom_call.1} parent=5 // pred_fallthru
        _
    $region6: #{tpu_custom_call.1} parent=1 // loop_footer
      %s29 = sadd.s32 1, %s25
    $region7: #{tpu_custom_call.1} parent=1 // loop_footer_branch
      %24 = sbr.rel target = $region3
    $region8: #{tpu_custom_call.1} parent=1 // loop_exit
      _
    %717 = vsyncpa [#allocation5], 1
    %s718 = scalar_lea.sflag [#allocation5], 1
    %719 = vsyncpa %s718, 1
    %720 = vsyncpa [#allocation8], 1
    %s721 = scalar_lea.sflag [#allocation8], 1
    %722 = vsyncpa %s721, 1
    %723 = vsyncpa [#allocation6], 1
    %s724 = scalar_lea.sflag [#allocation6], 1
    %725 = vsyncpa %s724, 1
    %726 = vsyncpa [#allocation12], 1
    %s727 = scalar_lea.sflag [#allocation12], 1
    %728 = vsyncpa %s727, 1

</llo_original>
